<compile_context>
chip_gen: v7x
topology: tpu7x:2x2x1
jax: 0.10.0
libtpu: 0.0.40
codegen_flags: <defaults>
</compile_context>

<pallas_src>
import jax
import jax.numpy as jnp
import numpy as np
from jax.experimental import pallas as pl
from jax.experimental.pallas import tpu as pltpu

EPS = 1e-5          # nn.BatchNorm2d default eps
NEG_SLOPE = 0.2     # nn.LeakyReLU(0.2)
LANE = 128
NUM_CORES = 2       # leading parallel axis for pass 1 (v7x has 2 TCs / chip)


def _round_up(x, m):
    return (x + m - 1) // m * m


def _cdiv(a, b):
    return (a + b - 1) // b


# ---------------- pass 1: conv^T matmul (bf16 out) + per-channel statistics ----------------
def pass1_kernel(p_ref, w_ref, conv_ref, sum_ref, sumsq_ref, abssum_ref):
    # Stats outputs have a constant index_map along the inner ("arbitrary") axis,
    # so the blocks stay resident in VMEM; accumulate into them directly.
    @pl.when(pl.program_id(1) == 0)
    def _():
        sum_ref[...] = jnp.zeros_like(sum_ref)
        sumsq_ref[...] = jnp.zeros_like(sumsq_ref)
        abssum_ref[...] = jnp.zeros_like(abssum_ref)

    # conv^T tile: (C_pad, tile_m) = (C_pad, K_pad) @ (K_pad, tile_m), f32 accumulation.
    conv = jnp.dot(w_ref[...], p_ref[...], preferred_element_type=jnp.float32)

    # f32 stats before the bf16 store (padded K / M / C regions are zero -> contribute nothing)
    sum_ref[...] += jnp.sum(conv, axis=1, keepdims=True)
    sumsq_ref[...] += jnp.sum(conv * conv, axis=1, keepdims=True)
    abssum_ref[...] += jnp.sum(jnp.abs(conv), axis=1, keepdims=True)

    conv_ref[...] = conv.astype(conv_ref.dtype)


# ---------------- pass 2: fused BN affine + LeakyReLU ----------------
def pass2_kernel(conv_ref, scale_ref, shift_ref, y_ref):
    y = conv_ref[...].astype(jnp.float32) * scale_ref[...] + shift_ref[...]
    y_ref[...] = jnp.where(y >= 0.0, y, NEG_SLOPE * y)


def block_forward(x, weight, gamma, beta, *, stride=2, padding=1, l1_mode=False):
    """x: (N, C_in, H, W) NCHW float32; weight: (C_out, C_in, KH, KW) (PyTorch OIHW)."""
    N, Cin, H, W = x.shape
    Cout, _, KH, KW = weight.shape
    Ho = (H + 2 * padding - KH) // stride + 1
    Wo = (W + 2 * padding - KW) // stride + 1

    M = N * Ho * Wo
    K = KH * KW * Cin
    K_pad = _round_up(K, 16)                 # compact: bf16 sublane packing only
    C_pad = _round_up(Cout, 8)               # channels on sublanes (8 for f32 tiles)

    # Large lane tiles (>=512 reaches ~85% of HBM roofline); split M across 2 cores.
    tile_m = min(2048, _round_up(_cdiv(M, NUM_CORES), LANE))
    n_tiles = _cdiv(M, tile_m)
    n_per_core = _cdiv(n_tiles, NUM_CORES)
    M_pad = NUM_CORES * n_per_core * tile_m

    # ---- im2col directly in transposed (K, M) layout, bf16, from NCHW ----
    x_t = jnp.transpose(x.astype(jnp.bfloat16), (1, 0, 2, 3))        # (Cin, N, H, W)
    x_p = jnp.pad(x_t, ((0, 0), (0, 0), (padding, padding), (padding, padding)))
    rows = []
    for kh in range(KH):
        for kw in range(KW):
            sl = x_p[:, :, kh:kh + stride * (Ho - 1) + 1:stride,
                     kw:kw + stride * (Wo - 1) + 1:stride]            # (Cin, N, Ho, Wo)
            rows.append(sl.reshape(Cin, M))
    p_t = jnp.concatenate(rows, axis=0)                               # (K, M), row = (kh,kw,cin)
    p_t = jnp.pad(p_t, ((0, K_pad - K), (0, M_pad - M)))              # zero pad -> no stat impact

    # weight: OIHW -> (Cout, KH, KW, Cin) -> (Cout, K) matching the patch row order
    w2 = jnp.transpose(weight, (0, 2, 3, 1)).reshape(Cout, K)
    w2 = jnp.pad(w2, ((0, C_pad - Cout), (0, K_pad - K))).astype(jnp.bfloat16)

    # ---- pass 1: conv (bf16) + per-channel / per-core statistics ----
    cost1 = pl.CostEstimate(
        flops=2 * M_pad * K_pad * C_pad + 5 * M_pad * C_pad,
        transcendentals=0,
        bytes_accessed=(K_pad * M_pad * 2 + C_pad * K_pad * 2
                        + C_pad * M_pad * 2 + 3 * NUM_CORES * C_pad * 4),
    )
    conv_bf, s, ss, sa = pl.pallas_call(
        pass1_kernel,
        grid=(NUM_CORES, n_per_core),
        in_specs=[
            pl.BlockSpec((K_pad, tile_m), lambda c, i: (0, c * n_per_core + i)),
            pl.BlockSpec((C_pad, K_pad), lambda c, i: (0, 0)),        # resident weight
        ],
        out_specs=(
            pl.BlockSpec((C_pad, tile_m), lambda c, i: (0, c * n_per_core + i)),
            pl.BlockSpec((None, C_pad, 1), lambda c, i: (c, 0, 0)),   # per-core partial sums
            pl.BlockSpec((None, C_pad, 1), lambda c, i: (c, 0, 0)),
            pl.BlockSpec((None, C_pad, 1), lambda c, i: (c, 0, 0)),
        ),
        out_shape=(
            jax.ShapeDtypeStruct((C_pad, M_pad), jnp.bfloat16),
            jax.ShapeDtypeStruct((NUM_CORES, C_pad, 1), jnp.float32),
            jax.ShapeDtypeStruct((NUM_CORES, C_pad, 1), jnp.float32),
            jax.ShapeDtypeStruct((NUM_CORES, C_pad, 1), jnp.float32),
        ),
        compiler_params=pltpu.CompilerParams(
            dimension_semantics=("parallel", "arbitrary"),
            vmem_limit_bytes=48 * 1024 * 1024),                        # safe under v7x 64 MiB
        cost_estimate=cost1,
    )(p_t, w2)

    # ---- tiny JAX glue: combine per-core partials, fold BN stats (biased variance) ----
    s_tot = jnp.sum(s, axis=0)                                        # (C_pad, 1)
    ss_tot = jnp.sum(ss, axis=0)
    sa_tot = jnp.sum(sa, axis=0)
    mean = s_tot / M
    var = jnp.maximum(ss_tot / M - mean * mean, 0.0)
    g = jnp.pad(gamma.astype(jnp.float32), (0, C_pad - Cout)).reshape(C_pad, 1)
    b = jnp.pad(beta.astype(jnp.float32), (0, C_pad - Cout)).reshape(C_pad, 1)
    scale = g * jax.lax.rsqrt(var + EPS)
    shift = b - mean * scale
    l1 = jnp.sum(sa_tot) / M        # == torch.abs(x_conv).sum(dim=1).mean()

    # ---- pass 2: fused affine + LeakyReLU on the compact (C_pad, M) layout ----
    cost2 = pl.CostEstimate(
        flops=4 * M_pad * C_pad,
        transcendentals=0,
        bytes_accessed=(C_pad * M_pad * 2 + C_pad * M_pad * 4 + 2 * C_pad * 4),
    )
    y_t = pl.pallas_call(
        pass2_kernel,
        grid=(M_pad // tile_m,),
        in_specs=[
            pl.BlockSpec((C_pad, tile_m), lambda i: (0, i)),
            pl.BlockSpec((C_pad, 1), lambda i: (0, 0)),
            pl.BlockSpec((C_pad, 1), lambda i: (0, 0)),
        ],
        out_specs=pl.BlockSpec((C_pad, tile_m), lambda i: (0, i)),
        out_shape=jax.ShapeDtypeStruct((C_pad, M_pad), jnp.float32),
        compiler_params=pltpu.CompilerParams(
            dimension_semantics=("parallel",),
            vmem_limit_bytes=48 * 1024 * 1024),
        cost_estimate=cost2,
    )(conv_bf, scale, shift)

    # (Cout, N*Ho*Wo) -> (N, Cout, Ho, Wo): only a cheap leading-axis swap.
    y = jnp.transpose(y_t[:Cout, :M].reshape(Cout, N, Ho, Wo), (1, 0, 2, 3))
    if l1_mode:
        return y, l1
    return y


def reference_forward(x, weight, gamma, beta):
    """Pure-JAX reference matching the PyTorch forward (training-mode BN)."""
    conv = jax.lax.conv_general_dilated(
        x, weight, window_strides=(2, 2), padding=((1, 1), (1, 1)),
        dimension_numbers=('NCHW', 'OIHW', 'NCHW'))
    mean = jnp.mean(conv, axis=(0, 2, 3), keepdims=True)
    var = jnp.mean((conv - mean) ** 2, axis=(0, 2, 3), keepdims=True)
    xhat = (conv - mean) / jnp.sqrt(var + EPS)
    y = xhat * gamma.reshape(1, -1, 1, 1) + beta.reshape(1, -1, 1, 1)
    y = jnp.where(y >= 0, y, NEG_SLOPE * y)
    l1 = jnp.mean(jnp.sum(jnp.abs(conv), axis=1))
    return y, l1


if __name__ == "__main__":
    # small shapes consistent with the module: NCHW = (2, 4, 16, 16), C_out = 8
    N, Cin, H, W = 2, 4, 16, 16
    Cout, KH, KW = 8, 3, 3

    key = jax.random.PRNGKey(0)
    kx, kw = jax.random.split(key)
    x = jax.random.normal(kx, (N, Cin, H, W), dtype=jnp.float32)
    weight = 0.1 * jax.random.normal(kw, (Cout, Cin, KH, KW), dtype=jnp.float32)
    gamma = jnp.ones((Cout,), dtype=jnp.float32)
    beta = jnp.zeros((Cout,), dtype=jnp.float32)

    y, l1 = block_forward(x, weight, gamma, beta, l1_mode=True)
    y = jax.block_until_ready(y)
    l1 = jax.block_until_ready(l1)

    y_ref, l1_ref = reference_forward(x, weight, gamma, beta)
    assert y.shape == (N, Cout, H // 2, W // 2), y.shape
    # bf16 MXU inputs + bf16 conv intermediate (f32 stats) -> loosened tolerance
    np.testing.assert_allclose(np.asarray(y), np.asarray(y_ref), rtol=2e-2, atol=2e-2)
    np.testing.assert_allclose(np.asarray(l1), np.asarray(l1_ref), rtol=2e-2, atol=2e-2)

    print("KERNEL_OK")
</pallas_src>

<mosaic_0001>
module attributes {stable_mosaic.version = 11 : i64} {
  func.func @pass1_kernel(%arg0: i32, %arg1: i32, %arg2: memref<48x128xbf16, #tpu.memory_space<vmem>>, %arg3: memref<8x48xbf16, #tpu.memory_space<vmem>>, %arg4: memref<8x128xbf16, #tpu.memory_space<vmem>>, %arg5: memref<1x8x1xf32, #tpu.memory_space<vmem>>, %arg6: memref<1x8x1xf32, #tpu.memory_space<vmem>>, %arg7: memref<1x8x1xf32, #tpu.memory_space<vmem>>) attributes {dimension_semantics = [#tpu.dimension_semantics<parallel>, #tpu.dimension_semantics<arbitrary>], iteration_bounds = array<i64: 2, 1>, scalar_prefetch = 0 : i64, scratch_operands = 0 : i64, tpu.core_type = #tpu.core_type<tc>, window_params = [{transform_indices = @transform_0, window_bounds = array<i64: 48, 128>}, {pipeline_mode = #tpu.pipeline_mode<synchronous>, transform_indices = @transform_1, window_bounds = array<i64: 8, 48>}, {transform_indices = @transform_2, window_bounds = array<i64: 8, 128>}, {transform_indices = @transform_3, window_bounds = array<i64: 1, 8, 1>}, {transform_indices = @transform_4, window_bounds = array<i64: 1, 8, 1>}, {transform_indices = @transform_5, window_bounds = array<i64: 1, 8, 1>}]} {
    %c0_i32 = arith.constant 0 : i32
    %0 = arith.cmpi eq, %arg1, %c0_i32 : i32
    %1 = arith.extui %0 : i1 to i32
    %c0_i32_0 = arith.constant 0 : i32
    %2 = arith.cmpi ne, %1, %c0_i32_0 : i32
    scf.if %2 {
      %cst_27 = arith.constant 0.000000e+00 : f32
      %34 = vector.broadcast %cst_27 : f32 to vector<8x1xf32>
      %c0_28 = arith.constant 0 : index
      %c0_29 = arith.constant 0 : index
      %c0_30 = arith.constant 0 : index
      %35 = vector.load %arg5[%c0_28, %c0_29, %c0_30] : memref<1x8x1xf32, #tpu.memory_space<vmem>>, vector<1x8x1xf32>
      %36 = vector.shape_cast %35 : vector<1x8x1xf32> to vector<8x1xf32>
      %37 = vector.shape_cast %34 : vector<8x1xf32> to vector<1x8x1xf32>
      tpu.vector_store %arg5[%c0_28, %c0_29, %c0_30], %37 {strides = array<i32>} : memref<1x8x1xf32, #tpu.memory_space<vmem>>, vector<1x8x1xf32>,
      %cst_31 = arith.constant 0.000000e+00 : f32
      %38 = vector.broadcast %cst_31 : f32 to vector<8x1xf32>
      %c0_32 = arith.constant 0 : index
      %c0_33 = arith.constant 0 : index
      %c0_34 = arith.constant 0 : index
      %39 = vector.load %arg6[%c0_32, %c0_33, %c0_34] : memref<1x8x1xf32, #tpu.memory_space<vmem>>, vector<1x8x1xf32>
      %40 = vector.shape_cast %39 : vector<1x8x1xf32> to vector<8x1xf32>
      %41 = vector.shape_cast %38 : vector<8x1xf32> to vector<1x8x1xf32>
      tpu.vector_store %arg6[%c0_32, %c0_33, %c0_34], %41 {strides = array<i32>} : memref<1x8x1xf32, #tpu.memory_space<vmem>>, vector<1x8x1xf32>,
      %cst_35 = arith.constant 0.000000e+00 : f32
      %42 = vector.broadcast %cst_35 : f32 to vector<8x1xf32>
      %c0_36 = arith.constant 0 : index
      %c0_37 = arith.constant 0 : index
      %c0_38 = arith.constant 0 : index
      %43 = vector.load %arg7[%c0_36, %c0_37, %c0_38] : memref<1x8x1xf32, #tpu.memory_space<vmem>>, vector<1x8x1xf32>
      %44 = vector.shape_cast %43 : vector<1x8x1xf32> to vector<8x1xf32>
      %45 = vector.shape_cast %42 : vector<8x1xf32> to vector<1x8x1xf32>
      tpu.vector_store %arg7[%c0_36, %c0_37, %c0_38], %45 {strides = array<i32>} : memref<1x8x1xf32, #tpu.memory_space<vmem>>, vector<1x8x1xf32>,
    } else {
    }
    %c0 = arith.constant 0 : index
    %c0_1 = arith.constant 0 : index
    %3 = vector.load %arg3[%c0, %c0_1] : memref<8x48xbf16, #tpu.memory_space<vmem>>, vector<8x48xbf16>
    %c0_2 = arith.constant 0 : index
    %c0_3 = arith.constant 0 : index
    %4 = vector.load %arg2[%c0_2, %c0_3] : memref<48x128xbf16, #tpu.memory_space<vmem>>, vector<48x128xbf16>
    %cst = arith.constant dense<0.000000e+00> : vector<8x128xf32>
    %5 = tpu.matmul %3, %4, %cst {dimension_numbers = #tpu.dot_dimension_numbers<[1], [0], [0], [1], [0, 0, 1, 1], [], []>} : vector<8x48xbf16>, vector<48x128xbf16>, vector<8x128xf32> -> vector<8x128xf32>
    %c0_4 = arith.constant 0 : index
    %c0_5 = arith.constant 0 : index
    %c0_6 = arith.constant 0 : index
    %6 = vector.load %arg5[%c0_4, %c0_5, %c0_6] : memref<1x8x1xf32, #tpu.memory_space<vmem>>, vector<1x8x1xf32>
    %7 = vector.shape_cast %6 : vector<1x8x1xf32> to vector<8x1xf32>
    %cst_7 = arith.constant dense<0.000000e+00> : vector<8xf32>
    %8 = vector.multi_reduction <add>, %5, %cst_7 [1] : vector<8x128xf32> to vector<8xf32>
    %9 = vector.shape_cast %8 : vector<8xf32> to vector<8x1xf32>
    %10 = arith.addf %7, %9 : vector<8x1xf32>
    %c0_8 = arith.constant 0 : index
    %c0_9 = arith.constant 0 : index
    %c0_10 = arith.constant 0 : index
    %11 = vector.load %arg5[%c0_8, %c0_9, %c0_10] : memref<1x8x1xf32, #tpu.memory_space<vmem>>, vector<1x8x1xf32>
    %12 = vector.shape_cast %11 : vector<1x8x1xf32> to vector<8x1xf32>
    %13 = vector.shape_cast %10 : vector<8x1xf32> to vector<1x8x1xf32>
    tpu.vector_store %arg5[%c0_8, %c0_9, %c0_10], %13 {strides = array<i32>} : memref<1x8x1xf32, #tpu.memory_space<vmem>>, vector<1x8x1xf32>,
    %c0_11 = arith.constant 0 : index
    %c0_12 = arith.constant 0 : index
    %c0_13 = arith.constant 0 : index
    %14 = vector.load %arg6[%c0_11, %c0_12, %c0_13] : memref<1x8x1xf32, #tpu.memory_space<vmem>>, vector<1x8x1xf32>
    %15 = vector.shape_cast %14 : vector<1x8x1xf32> to vector<8x1xf32>
    %16 = arith.mulf %5, %5 : vector<8x128xf32>
    %cst_14 = arith.constant dense<0.000000e+00> : vector<8xf32>
    %17 = vector.multi_reduction <add>, %16, %cst_14 [1] : vector<8x128xf32> to vector<8xf32>
    %18 = vector.shape_cast %17 : vector<8xf32> to vector<8x1xf32>
    %19 = arith.addf %15, %18 : vector<8x1xf32>
    %c0_15 = arith.constant 0 : index
    %c0_16 = arith.constant 0 : index
    %c0_17 = arith.constant 0 : index
    %20 = vector.load %arg6[%c0_15, %c0_16, %c0_17] : memref<1x8x1xf32, #tpu.memory_space<vmem>>, vector<1x8x1xf32>
    %21 = vector.shape_cast %20 : vector<1x8x1xf32> to vector<8x1xf32>
    %22 = vector.shape_cast %19 : vector<8x1xf32> to vector<1x8x1xf32>
    tpu.vector_store %arg6[%c0_15, %c0_16, %c0_17], %22 {strides = array<i32>} : memref<1x8x1xf32, #tpu.memory_space<vmem>>, vector<1x8x1xf32>,
    %c0_18 = arith.constant 0 : index
    %c0_19 = arith.constant 0 : index
    %c0_20 = arith.constant 0 : index
    %23 = vector.load %arg7[%c0_18, %c0_19, %c0_20] : memref<1x8x1xf32, #tpu.memory_space<vmem>>, vector<1x8x1xf32>
    %24 = vector.shape_cast %23 : vector<1x8x1xf32> to vector<8x1xf32>
    %25 = math.absf %5 : vector<8x128xf32>
    %cst_21 = arith.constant dense<0.000000e+00> : vector<8xf32>
    %26 = vector.multi_reduction <add>, %25, %cst_21 [1] : vector<8x128xf32> to vector<8xf32>
    %27 = vector.shape_cast %26 : vector<8xf32> to vector<8x1xf32>
    %28 = arith.addf %24, %27 : vector<8x1xf32>
    %c0_22 = arith.constant 0 : index
    %c0_23 = arith.constant 0 : index
    %c0_24 = arith.constant 0 : index
    %29 = vector.load %arg7[%c0_22, %c0_23, %c0_24] : memref<1x8x1xf32, #tpu.memory_space<vmem>>, vector<1x8x1xf32>
    %30 = vector.shape_cast %29 : vector<1x8x1xf32> to vector<8x1xf32>
    %31 = vector.shape_cast %28 : vector<8x1xf32> to vector<1x8x1xf32>
    tpu.vector_store %arg7[%c0_22, %c0_23, %c0_24], %31 {strides = array<i32>} : memref<1x8x1xf32, #tpu.memory_space<vmem>>, vector<1x8x1xf32>,
    %32 = arith.truncf %5 : vector<8x128xf32> to vector<8x128xbf16>
    %c0_25 = arith.constant 0 : index
    %c0_26 = arith.constant 0 : index
    %33 = vector.load %arg4[%c0_25, %c0_26] : memref<8x128xbf16, #tpu.memory_space<vmem>>, vector<8x128xbf16>
    tpu.vector_store %arg4[%c0_25, %c0_26], %32 {strides = array<i32>} : memref<8x128xbf16, #tpu.memory_space<vmem>>, vector<8x128xbf16>,
    return
  }
  func.func @transform_0(%arg0: i32, %arg1: i32) -> (i32, i32) {
    %c1_i32 = arith.constant 1 : i32
    %0 = arith.muli %arg0, %c1_i32 : i32
    %1 = arith.addi %0, %arg1 : i32
    %c0_i32 = arith.constant 0 : i32
    %c0_i32_0 = arith.constant 0 : i32
    return %c0_i32, %1 : i32, i32
  }
  func.func @transform_1(%arg0: i32, %arg1: i32) -> (i32, i32) {
    %c0_i32 = arith.constant 0 : i32
    %c0_i32_0 = arith.constant 0 : i32
    %c0_i32_1 = arith.constant 0 : i32
    return %c0_i32, %c0_i32_0 : i32, i32
  }
  func.func @transform_2(%arg0: i32, %arg1: i32) -> (i32, i32) {
    %c1_i32 = arith.constant 1 : i32
    %0 = arith.muli %arg0, %c1_i32 : i32
    %1 = arith.addi %0, %arg1 : i32
    %c0_i32 = arith.constant 0 : i32
    %c0_i32_0 = arith.constant 0 : i32
    return %c0_i32, %1 : i32, i32
  }
  func.func @transform_3(%arg0: i32, %arg1: i32) -> (i32, i32, i32) {
    %c0_i32 = arith.constant 0 : i32
    %c0_i32_0 = arith.constant 0 : i32
    %c0_i32_1 = arith.constant 0 : i32
    return %arg0, %c0_i32, %c0_i32_0 : i32, i32, i32
  }
  func.func @transform_4(%arg0: i32, %arg1: i32) -> (i32, i32, i32) {
    %c0_i32 = arith.constant 0 : i32
    %c0_i32_0 = arith.constant 0 : i32
    %c0_i32_1 = arith.constant 0 : i32
    return %arg0, %c0_i32, %c0_i32_0 : i32, i32, i32
  }
  func.func @transform_5(%arg0: i32, %arg1: i32) -> (i32, i32, i32) {
    %c0_i32 = arith.constant 0 : i32
    %c0_i32_0 = arith.constant 0 : i32
    %c0_i32_1 = arith.constant 0 : i32
    return %arg0, %c0_i32, %c0_i32_0 : i32, i32, i32
  }
}

</mosaic_0001>

<llo_original>
// kernel: tpu_custom_call.1
$region0: #{tpu_custom_call.1}
  #allocation0 [shape = 'u32[]', space=smem, size = 0x4, offset = 0x4, fixed_abs, tag = 'smem constant byte address 0x4 - core index']
  #allocation1 [shape = 'u32[144,128]{1,0:T(1,128)}', space=vmem, size = 0x12000, scoped, tag = 'internal scratch']
  %s0 = inlined_call_operand.hbm [shape: bf16[48,256], index: 0, kind: input, shape index: {}]
  %s1 = inlined_call_operand.hbm [shape: bf16[8,48], index: 1, kind: input, shape index: {}]
  %s2 = inlined_call_operand.hbm [shape: bf16[8,256], index: 2, kind: output, shape index: {0}]
  %s3 = inlined_call_operand.vmem [shape: f32[2,8,1], index: 3, kind: output, shape index: {1}]
  %s4 = inlined_call_operand.vmem [shape: f32[2,8,1], index: 4, kind: output, shape index: {2}]
  %s5 = inlined_call_operand.vmem [shape: f32[2,8,1], index: 5, kind: output, shape index: {3}]
  %6 = xla_tuple %s2, %s3, %s4, %s5
  %s7 = sld [smem:[#allocation0]]
  $region77: #{tpu_custom_call.1} parent=0
    _
  %s9 = ssub.s32 1, %s7
  %s10 = scalar_select 0, %s9, %s7
  $region1: #{tpu_custom_call.1} parent=0
    #allocation2 [shape = 'u8[24576]{0}', space=vmem, size = 0x6000, scoped, tag = 'input window, operand 0']
    #allocation3 [shape = 's32[2]{0}', space=sflag, size = 0x8, scoped, tag = 'scoped memory for tpu_custom_call.1']
    #allocation4 [shape = 's32[2]{0}', space=sflag, size = 0x8, scoped, tag = 'scoped memory for tpu_custom_call.1']
    #allocation5 [shape = 'u8[2048]{0}', space=vmem, size = 0x800, scoped, tag = 'input window, operand 1, single buffered']
    #allocation6 [shape = 's32[1]{0}', space=sflag, size = 0x4, scoped, tag = 'scoped memory for tpu_custom_call.1']
    #allocation7 [shape = 'u8[4096]{0}', space=vmem, size = 0x1000, scoped, tag = 'output window, operand 0']
    %11 = vsyncpa [#allocation3], 0
    %s12 = scalar_lea.sflag [#allocation3], 1
    %13 = vsyncpa %s12, 0
    %14 = vsyncpa [#allocation6], 0
    %15 = vsyncpa [#allocation4], 0
    %s16 = scalar_lea.sflag [#allocation4], 1
    %17 = vsyncpa %s16, 0
    loop: start=0, step=1, limit=4
    $region2: #{tpu_custom_call.1} parent=1 // loop_pre_header
      _
    $region3: #{tpu_custom_call.1} parent=1 // loop_header
      %s19 = sphi 0, %s23
      %p20 = scmp.ge.s32.totalorder %s19, 4
      %s26 = sphi 0, %s38
      %s27 = sphi 0, %s34
      %s28 = sphi 0, %s26
      %s29 = sphi 0, %s27
      %s30 = sphi 0, %s28
      %s31 = sphi 0, %s29
      %s43 = sphi 0, %s45
      %s46 = sphi 0, %s43
      %s47 = sphi 0, %s46
      %s63 = sphi 0, %s47
      %s67 = sphi 0, %s67
      %s69 = sphi 0, %s67
      %s70 = sphi 0, %s69
      %s84 = sphi 0, %s70
      %s92 = sphi 0, %s94
      %s95 = sphi 0, %s92
      %s96 = sphi 0, %s95
      %s112 = sphi 0, %s96
      %s118 = sphi 0, %s120
      %s121 = sphi 0, %s118
      %s122 = sphi 0, %s121
      %s138 = sphi 0, %s122
      %s144 = sphi 0, %s146
      %s147 = sphi 0, %s144
      %s148 = sphi 0, %s147
      %s164 = sphi 0, %s148
      %s170 = sphi 0, %s172
      %s173 = sphi 0, %s170
      %s174 = sphi 0, %s173
      %s190 = sphi 0, %s174
    $region4: #{tpu_custom_call.1} parent=1 // loop_header_branch
      %22 = sbr.rel (%p20) target = $region8
    $region5: #{tpu_custom_call.1} parent=1 // loop_body
      %s24 = ssub.s32 %s19, 1
      %s25 = ssub.s32 %s19, 2
      %s32 = sadd.s32 1, %s27
      %p33 = scmp.ge.s32.totalorder %s32, 1
      %s34 = scalar_select %p33, 0, %s32
      %s35 = sadd.s32 1, %s26
      %s36 = scalar_select %p33, %s35, %s26
      %p37 = scmp.ge.s32.totalorder %s36, 2
      %s38 = scalar_select %p37, 0, %s36
      %s39 = sadd.s32 %s26, %s27
      %s40 = sadd.s32 %s38, %s34
      %s41 = ssub.s32 %s39, %s40
      %p42 = scmp.eq.s32.totalorder %s41, 0
      %s44 = sadd.s32 %s43, 1
      %s45 = scalar_select %p42, %s43, %s44
      %p48 = pneg %p42
      %p49 = scmp.eq.s32.totalorder %s19, 1
      %p50 = por %p48, %p49
      %p51 = scmp.ne.s32.totalorder %s43, %s46
      %p52 = scmp.eq.s32.totalorder %s19, 0
      %p53 = por %p51, %p52
      %p54 = scmp.ne.s32.totalorder %s43, %s46
      %p55 = scmp.eq.s32.totalorder %s24, 1
      %p56 = por %p54, %p55
      %p57 = scmp.ne.s32.totalorder %s46, %s47
      %p58 = scmp.eq.s32.totalorder %s24, 0
      %p59 = por %p57, %p58
      %p60 = scmp.ne.s32.totalorder %s46, %s47
      %p61 = scmp.eq.s32.totalorder %s25, 1
      %p62 = por %p60, %p61
      %p64 = scmp.ne.s32.totalorder %s47, %s63
      %p65 = scmp.eq.s32.totalorder %s25, 0
      %p66 = por %p64, %p65
      %s68 = sadd.s32 %s67, 1
      %p71 = scmp.eq.s32.totalorder %s19, 1
      %p72 = scmp.ne.s32.totalorder %s67, %s69
      %p73 = scmp.eq.s32.totalorder %s19, 0
      %p74 = por %p72, %p73
      %p75 = scmp.ne.s32.totalorder %s67, %s69
      %p76 = scmp.eq.s32.totalorder %s24, 1
      %p77 = por %p75, %p76
      %p78 = scmp.ne.s32.totalorder %s69, %s70
      %p79 = scmp.eq.s32.totalorder %s24, 0
      %p80 = por %p78, %p79
      %p81 = scmp.ne.s32.totalorder %s69, %s70
      %p82 = scmp.eq.s32.totalorder %s25, 1
      %p83 = por %p81, %p82
      %p85 = scmp.ne.s32.totalorder %s70, %s84
      %p86 = scmp.eq.s32.totalorder %s25, 0
      %p87 = por %p85, %p86
      %s88 = sadd.s32 %s26, %s27
      %s89 = sadd.s32 %s38, %s34
      %s90 = ssub.s32 %s88, %s89
      %p91 = scmp.eq.s32.totalorder %s90, 0
      %s93 = sadd.s32 %s92, 1
      %s94 = scalar_select %p91, %s92, %s93
      %p97 = pneg %p91
      %p98 = scmp.eq.s32.totalorder %s19, 1
      %p99 = por %p97, %p98
      %p100 = scmp.ne.s32.totalorder %s92, %s95
      %p101 = scmp.eq.s32.totalorder %s19, 0
      %p102 = por %p100, %p101
      %p103 = scmp.ne.s32.totalorder %s92, %s95
      %p104 = scmp.eq.s32.totalorder %s24, 1
      %p105 = por %p103, %p104
      %p106 = scmp.ne.s32.totalorder %s95, %s96
      %p107 = scmp.eq.s32.totalorder %s24, 0
      %p108 = por %p106, %p107
      %p109 = scmp.ne.s32.totalorder %s95, %s96
      %p110 = scmp.eq.s32.totalorder %s25, 1
      %p111 = por %p109, %p110
      %p113 = scmp.ne.s32.totalorder %s96, %s112
      %p114 = scmp.eq.s32.totalorder %s25, 0
      %p115 = por %p113, %p114
      %s116 = ssub.s32 %s26, %s38
      %p117 = scmp.eq.s32.totalorder %s116, 0
      %s119 = sadd.s32 %s118, 1
      %s120 = scalar_select %p117, %s118, %s119
      %p123 = pneg %p117
      %p124 = scmp.eq.s32.totalorder %s19, 1
      %p125 = por %p123, %p124
      %p126 = scmp.ne.s32.totalorder %s118, %s121
      %p127 = scmp.eq.s32.totalorder %s19, 0
      %p128 = por %p126, %p127
      %p129 = scmp.ne.s32.totalorder %s118, %s121
      %p130 = scmp.eq.s32.totalorder %s24, 1
      %p131 = por %p129, %p130
      %p132 = scmp.ne.s32.totalorder %s121, %s122
      %p133 = scmp.eq.s32.totalorder %s24, 0
      %p134 = por %p132, %p133
      %p135 = scmp.ne.s32.totalorder %s121, %s122
      %p136 = scmp.eq.s32.totalorder %s25, 1
      %p137 = por %p135, %p136
      %p139 = scmp.ne.s32.totalorder %s122, %s138
      %p140 = scmp.eq.s32.totalorder %s25, 0
      %p141 = por %p139, %p140
      %s142 = ssub.s32 %s26, %s38
      %p143 = scmp.eq.s32.totalorder %s142, 0
      %s145 = sadd.s32 %s144, 1
      %s146 = scalar_select %p143, %s144, %s145
      %p149 = pneg %p143
      %p150 = scmp.eq.s32.totalorder %s19, 1
      %p151 = por %p149, %p150
      %p152 = scmp.ne.s32.totalorder %s144, %s147
      %p153 = scmp.eq.s32.totalorder %s19, 0
      %p154 = por %p152, %p153
      %p155 = scmp.ne.s32.totalorder %s144, %s147
      %p156 = scmp.eq.s32.totalorder %s24, 1
      %p157 = por %p155, %p156
      %p158 = scmp.ne.s32.totalorder %s147, %s148
      %p159 = scmp.eq.s32.totalorder %s24, 0
      %p160 = por %p158, %p159
      %p161 = scmp.ne.s32.totalorder %s147, %s148
      %p162 = scmp.eq.s32.totalorder %s25, 1
      %p163 = por %p161, %p162
      %p165 = scmp.ne.s32.totalorder %s148, %s164
      %p166 = scmp.eq.s32.totalorder %s25, 0
      %p167 = por %p165, %p166
      %s168 = ssub.s32 %s26, %s38
      %p169 = scmp.eq.s32.totalorder %s168, 0
      %s171 = sadd.s32 %s170, 1
      %s172 = scalar_select %p169, %s170, %s171
      %p175 = pneg %p169
      %p176 = scmp.eq.s32.totalorder %s19, 1
      %p177 = por %p175, %p176
      %p178 = scmp.ne.s32.totalorder %s170, %s173
      %p179 = scmp.eq.s32.totalorder %s19, 0
      %p180 = por %p178, %p179
      %p181 = scmp.ne.s32.totalorder %s170, %s173
      %p182 = scmp.eq.s32.totalorder %s24, 1
      %p183 = por %p181, %p182
      %p184 = scmp.ne.s32.totalorder %s173, %s174
      %p185 = scmp.eq.s32.totalorder %s24, 0
      %p186 = por %p184, %p185
      %p187 = scmp.ne.s32.totalorder %s173, %s174
      %p188 = scmp.eq.s32.totalorder %s25, 1
      %p189 = por %p187, %p188
      %p191 = scmp.ne.s32.totalorder %s174, %s190
      %p192 = scmp.eq.s32.totalorder %s25, 0
      %p193 = por %p191, %p192
      %p194 = scmp.le.s32.totalorder 1, %s19
      %p195 = scmp.lt.s32.totalorder %s19, 3
      %p196 = pnand %p194, %p195
      %p197 = pneg %p196
      // Predicated region
      $region9: #{tpu_custom_call.1} parent=5 // pred_check
        _
      $region10: #{tpu_custom_call.1} parent=5 // pred_check_branch
        %199 = sbr.rel (%p196) target = $region12
      $region11: #{tpu_custom_call.1} parent=5 // pred_region
        %s200 = ssub.s32 %s19, 1
        // Predicated region
        $region13: #{tpu_custom_call.1} parent=11 // pred_check
          %p201 = pneg %p80
        $region14: #{tpu_custom_call.1} parent=11 // pred_check_branch
          %203 = sbr.rel (%p201) target = $region16
        $region15: #{tpu_custom_call.1} parent=11 // pred_region
          %s205 = ssub.s32 64, 64
          %206 = vsyncadd [#allocation6], %s205
          %s208 = sshll.u32 [#allocation5], 4
          %s209 = int_to_ptr.vmem [resolvable:$true] %s208
          %211 = dma.hbm_to_vmem [thread:$0]  %s1, 64, %s209, [#allocation6]
        $region16: #{tpu_custom_call.1} parent=11 // pred_fallthru
          _
      $region12: #{tpu_custom_call.1} parent=5 // pred_fallthru
        _
      %p212 = scmp.lt.s32.totalorder %s19, 2
      // Predicated region
      $region17: #{tpu_custom_call.1} parent=5 // pred_check
        %p213 = pneg %p212
      $region18: #{tpu_custom_call.1} parent=5 // pred_check_branch
        %215 = sbr.rel (%p213) target = $region20
      $region19: #{tpu_custom_call.1} parent=5 // pred_region
        // Predicated region
        $region21: #{tpu_custom_call.1} parent=19 // pred_check
          %p216 = pneg %p53
        $region22: #{tpu_custom_call.1} parent=19 // pred_check_branch
          %218 = sbr.rel (%p216) target = $region24
        $region23: #{tpu_custom_call.1} parent=19 // pred_region
          %s219 = sand.u32 %s43, 1
          %s220 = scalar_lea.sflag [#allocation3], %s219
          %s221 = sand.u32 %s43, 1
          %s222 = smul.addr %s221, 24
          %s223 = scalar_lea.vmem [#allocation2], %s222
          %s224 = sadd.s32 %s26, %s27
          %s226 = ssub.s32 384, 384
          %227 = vsyncadd %s220, %s226
          %s228 = smul.addr %s224, 64
          %s229 = scalar_lea.hbm %s0, %s228
          %s230 = sshll.u32 %s223, 4
          %s231 = int_to_ptr.vmem [resolvable:$true] %s230
          %236 = dma.hbm_to_vmem [thread:$0]  %s229, 384, %s231, %s220, 128, 64, 4
        $region24: #{tpu_custom_call.1} parent=19 // pred_fallthru
          _
      $region20: #{tpu_custom_call.1} parent=5 // pred_fallthru
        _
      %p237 = scmp.le.s32.totalorder 1, %s19
      %p238 = scmp.lt.s32.totalorder %s19, 3
      %p239 = pnand %p237, %p238
      %p240 = pneg %p239
      // Predicated region
      $region25: #{tpu_custom_call.1} parent=5 // pred_check
        _
      $region26: #{tpu_custom_call.1} parent=5 // pred_check_branch
        %242 = sbr.rel (%p239) target = $region28
      $region27: #{tpu_custom_call.1} parent=5 // pred_region
        %s243 = ssub.s32 %s19, 1
        %s244 = sand.u32 %s46, 1
        %s245 = scalar_lea.sflag [#allocation3], %s244
        %s246 = sand.u32 %s46, 1
        %s247 = smul.addr %s246, 24
        %s248 = scalar_lea.vmem [#allocation2], %s247
        // Predicated region
        $region29: #{tpu_custom_call.1} parent=27 // pred_check
          %p249 = pneg %p59
        $region30: #{tpu_custom_call.1} parent=27 // pred_check_branch
          %251 = sbr.rel (%p249) target = $region32
        $region31: #{tpu_custom_call.1} parent=27 // pred_region
          %252 = dma.done %s245, 384
        $region32: #{tpu_custom_call.1} parent=27 // pred_fallthru
          _
        // Predicated region
        $region33: #{tpu_custom_call.1} parent=27 // pred_check
          %p253 = pneg %p80
        $region34: #{tpu_custom_call.1} parent=27 // pred_check_branch
          %255 = sbr.rel (%p253) target = $region36
        $region35: #{tpu_custom_call.1} parent=27 // pred_region
          %256 = dma.done [#allocation6], 64
        $region36: #{tpu_custom_call.1} parent=27 // pred_fallthru
          _
        %s257 = sand.u32 %s46, 1
        %s258 = scalar_lea.sflag [#allocation3], %s257
        %s259 = sand.u32 %s46, 1
        %s260 = smul.addr %s259, 24
        %s261 = scalar_lea.vmem [#allocation2], %s260
        %p262 = pneg %p59
        %p263 = pneg %p56
        %p264 = pneg %p80
        %p265 = pneg %p77
        %p266 = pneg %p108
        %p267 = pneg %p105
        %s268 = sand.u32 %s95, 1
        %s269 = scalar_lea.sflag [#allocation4], %s268
        %s270 = sand.u32 %s95, 1
        %s271 = smul.addr %s270, 4
        %s272 = scalar_lea.vmem [#allocation7], %s271
        %p273 = pneg %p134
        %p274 = pneg %p131
        %p275 = scmp.lt.s32.totalorder %s28, 1
        %s276 = scalar_select %p275, %s28, 1
        %s277 = smul.addr %s276, 8
        %s278 = scalar_lea.vmem %s3, %s277
        %p279 = pneg %p160
        %p280 = pneg %p157
        %p281 = scmp.lt.s32.totalorder %s28, 1
        %s282 = scalar_select %p281, %s28, 1
        %s283 = smul.addr %s282, 8
        %s284 = scalar_lea.vmem %s4, %s283
        %p285 = pneg %p186
        %p286 = pneg %p183
        %p287 = scmp.lt.s32.totalorder %s28, 1
        %s288 = scalar_select %p287, %s28, 1
        %s289 = smul.addr %s288, 8
        %s290 = scalar_lea.vmem %s5, %s289
        %s291 = sadd.s32 %s28, %s29
        %s292 = sadd.s32 %s28, %s29
        %p293 = scmp.lt.s32.totalorder %s28, 1
        %s294 = scalar_select %p293, %s28, 1
        %s295 = smul.addr %s294, 8
        %s296 = scalar_lea.vmem %s3, %s295
        %p297 = scmp.lt.s32.totalorder %s28, 1
        %s298 = scalar_select %p297, %s28, 1
        %s299 = smul.addr %s298, 8
        %s300 = scalar_lea.vmem %s4, %s299
        %p301 = scmp.lt.s32.totalorder %s28, 1
        %s302 = scalar_select %p301, %s28, 1
        %s303 = smul.addr %s302, 8
        %s304 = scalar_lea.vmem %s5, %s303
        %p306 = scmp.eq.s32.totalorder %s29, 0
        // Predicated region
        $region37: #{tpu_custom_call.1} parent=27 // pred_check
          %p307 = pneg %p306
        $region38: #{tpu_custom_call.1} parent=27 // pred_check_branch
          %309 = sbr.rel (%p307) target = $region40
        $region39: #{tpu_custom_call.1} parent=27 // pred_region
          %vm310 = vcmask 7168
          %311 = vst.msk [vmem:[%s296] sm:$0xff] %vm310, 0.0
          %312 = vst.msk [vmem:[%s300] sm:$0xff] %vm310, 0.0
          %313 = vst.msk [vmem:[%s304] sm:$0xff] %vm310, 0.0
        $region40: #{tpu_custom_call.1} parent=27 // pred_fallthru
          _
        %v314 = vld [vmem:[#allocation5] sm:$0xf]
        %v315 = vld [vmem:[%s248] sm:$0xf]
        %v316 = vld [vmem:[%s248 + $0x4] sm:$0xf]
        %v317 = vld [vmem:[%s248 + $0x8] sm:$0xf]
        %v318 = vld [vmem:[%s248 + $0xc] sm:$0xf]
        %v319 = vld [vmem:[%s248 + $0x10] sm:$0xf]
        %v320 = vld [vmem:[%s248 + $0x14] sm:$0xf]
        %v327 = vunpack.c.l.b16 %v315
        %v328 = vunpack.c.l.b16 %v316
        %v329 = vunpack.c.l.b16 %v317
        %v330 = vunpack.c.l.b16 %v318
        %v331 = vunpack.c.l.b16 %v319
        %v332 = vunpack.c.l.b16 %v320
        %v333 = vpack.c.b16 %v328, %v327
        %v334 = vpack.c.b16 %v330, %v329
        %v335 = vpack.c.b16 %v332, %v331
        %vm339 = vcmask 392192
        %v341 = vsel %vm339, %v314, 0
        %343 = vmatprep.subr.bf16.mxu0 0
        %344 = vmatpush1.bf16.msra.mxu0 %v333
        %345 = vmatprep.subr.bf16.mxu0 0
        %346 = vmatpush1.bf16.msra.mxu0 %v334
        %347 = vmatprep.subr.bf16.mxu0 0
        %348 = vmatpush1.bf16.msra.mxu0 %v335
        %349 = vmatprep.subr.bf16.mxu0 0
        %350 = vmatpush1.bf16.msra.mxu0 0
        %351 = vmatprep.subr.bf16.mxu0 0
        %352 = vmatpush1.bf16.msra.mxu0 0
        %353 = vmatprep.subr.bf16.mxu0 0
        %354 = vmatpush1.bf16.msra.mxu0 0
        %355 = vmatprep.subr.bf16.mxu0 0
        %356 = vmatpush1.bf16.msra.mxu0 0
        %357 = vmatprep.subr.bf16.mxu0 0
        %358 = vmatpush1.bf16.msra.mxu0 0
        %359 = vmatprep.subr.bf16.mxu0 0
        %360 = vmatpush1.bf16.msra.mxu0 0
        %361 = vmatprep.subr.bf16.mxu0 0
        %362 = vmatpush1.bf16.msra.mxu0 0
        %363 = vmatprep.subr.bf16.mxu0 0
        %364 = vmatpush1.bf16.msra.mxu0 0
        %365 = vmatprep.subr.bf16.mxu0 0
        %366 = vmatpush1.bf16.msra.mxu0 0
        %367 = vmatprep.subr.bf16.mxu0 0
        %368 = vmatpush1.bf16.msra.mxu0 0
        %369 = vmatprep.subr.bf16.mxu0 0
        %370 = vmatpush1.bf16.msra.mxu0 0
        %371 = vmatprep.subr.bf16.mxu0 0
        %372 = vmatpush1.bf16.msra.mxu0 0
        %373 = vmatprep.subr.bf16.mxu0 0
        %374 = vmatpush1.bf16.msra.mxu0 0
        %375 = vmatprep.mubr.bf16.mxu0 0
        %376 = vmatmul.mubr.bf16.gmra.mrb[0].mxu0 %v341
        %v377 = vpop.f32.mrb[0].mxu0
        %v378 = vadd.f32 0.0, %v377
        %v379 = vpop.f32.mrb[0].mxu0
        %v380 = vpop.f32.mrb[0].mxu0
        %v381 = vpop.f32.mrb[0].mxu0
        %382 = vdwg.mxu0
        %v383 = vld [vmem:[%s296] sm:$0xff]
        %384 = vadd.xlane.f32.xlu0 %v378
        %v385 = vpop.xlane.xlu0 %384
        %v386 = vadd.f32 %v383, %v385
        %vm387 = vcmask 7168
        %388 = vst.msk [vmem:[%s296] sm:$0xff] %vm387, %v386
        %v389 = vld [vmem:[%s300] sm:$0xff]
        %v390 = vmul.f32 %v378, %v378
        %391 = vadd.xlane.f32.xlu0 %v390
        %v392 = vpop.xlane.xlu0 %391
        %v393 = vadd.f32 %v389, %v392
        %394 = vst.msk [vmem:[%s300] sm:$0xff] %vm387, %v393
        %v395 = vld [vmem:[%s304] sm:$0xff]
        %v396 = vand.u32 2147483647, %v378
        %397 = vadd.xlane.f32.xlu0 %v396
        %v398 = vpop.xlane.xlu0 %397
        %v399 = vadd.f32 %v395, %v398
        %400 = vst.msk [vmem:[%s304] sm:$0xff] %vm387, %v399
        %v401 = vpack.c.bf16 %v378, %v378
        %402 = vst [vmem:[%s272] sm:$0xf] %v401
        %s403 = sand.u32 %s95, 1
        %s404 = scalar_lea.sflag [#allocation4], %s403
        %s405 = sand.u32 %s95, 1
        %s406 = smul.addr %s405, 4
        %s407 = scalar_lea.vmem [#allocation7], %s406
        %p408 = scmp.lt.s32.totalorder %s28, 1
        %s409 = scalar_select %p408, %s28, 1
        %s410 = smul.addr %s409, 8
        %s411 = scalar_lea.vmem %s3, %s410
        %p412 = scmp.lt.s32.totalorder %s28, 1
        %s413 = scalar_select %p412, %s28, 1
        %s414 = smul.addr %s413, 8
        %s415 = scalar_lea.vmem %s4, %s414
        %p416 = scmp.lt.s32.totalorder %s28, 1
        %s417 = scalar_select %p416, %s28, 1
        %s418 = smul.addr %s417, 8
        %s419 = scalar_lea.vmem %s5, %s418
        // Predicated region
        $region41: #{tpu_custom_call.1} parent=27 // pred_check
          %p420 = pneg %p105
        $region42: #{tpu_custom_call.1} parent=27 // pred_check_branch
          %422 = sbr.rel (%p420) target = $region44
        $region43: #{tpu_custom_call.1} parent=27 // pred_region
          %s423 = sadd.s32 %s28, %s29
          %s425 = ssub.s32 64, 64
          %426 = vsyncadd %s404, %s425
          %s427 = smul.addr %s423, 64
          %s428 = scalar_lea.hbm %s2, %s427
          %s430 = sshll.u32 %s407, 4
          %s431 = int_to_ptr.vmem [resolvable:$true] %s430
          %433 = dma.vmem_to_hbm [thread:$0]  %s431, 64, %s428, %s404
        $region44: #{tpu_custom_call.1} parent=27 // pred_fallthru
          _
        // Predicated region
        $region45: #{tpu_custom_call.1} parent=27 // pred_check
          %p434 = pneg %p131
        $region46: #{tpu_custom_call.1} parent=27 // pred_check_branch
          %436 = sbr.rel (%p434) target = $region48
        $region47: #{tpu_custom_call.1} parent=27 // pred_region
          _
        $region48: #{tpu_custom_call.1} parent=27 // pred_fallthru
          _
        // Predicated region
        $region49: #{tpu_custom_call.1} parent=27 // pred_check
          %p437 = pneg %p157
        $region50: #{tpu_custom_call.1} parent=27 // pred_check_branch
          %439 = sbr.rel (%p437) target = $region52
        $region51: #{tpu_custom_call.1} parent=27 // pred_region
          _
        $region52: #{tpu_custom_call.1} parent=27 // pred_fallthru
          _
        // Predicated region
        $region53: #{tpu_custom_call.1} parent=27 // pred_check
          %p440 = pneg %p183
        $region54: #{tpu_custom_call.1} parent=27 // pred_check_branch
          %442 = sbr.rel (%p440) target = $region56
        $region55: #{tpu_custom_call.1} parent=27 // pred_region
          _
        $region56: #{tpu_custom_call.1} parent=27 // pred_fallthru
          _
      $region28: #{tpu_custom_call.1} parent=5 // pred_fallthru
        _
      %p443 = scmp.le.s32.totalorder 2, %s19
      // Predicated region
      $region57: #{tpu_custom_call.1} parent=5 // pred_check
        %p444 = pneg %p443
      $region58: #{tpu_custom_call.1} parent=5 // pred_check_branch
        %446 = sbr.rel (%p444) target = $region60
      $region59: #{tpu_custom_call.1} parent=5 // pred_region
        %s447 = ssub.s32 %s19, 2
        // Predicated region
        $region61: #{tpu_custom_call.1} parent=59 // pred_check
          %p448 = pneg %p111
        $region62: #{tpu_custom_call.1} parent=59 // pred_check_branch
          %450 = sbr.rel (%p448) target = $region64
        $region63: #{tpu_custom_call.1} parent=59 // pred_region
          %s451 = sand.u32 %s96, 1
          %s452 = scalar_lea.sflag [#allocation4], %s451
          %s453 = sand.u32 %s96, 1
          %s454 = smul.addr %s453, 4
          %s455 = scalar_lea.vmem [#allocation7], %s454
          %456 = dma.done %s452, 64
        $region64: #{tpu_custom_call.1} parent=59 // pred_fallthru
          _
        // Predicated region
        $region65: #{tpu_custom_call.1} parent=59 // pred_check
          %p457 = pneg %p137
        $region66: #{tpu_custom_call.1} parent=59 // pred_check_branch
          %459 = sbr.rel (%p457) target = $region68
        $region67: #{tpu_custom_call.1} parent=59 // pred_region
          %p460 = scmp.lt.s32.totalorder %s30, 1
          %s461 = scalar_select %p460, %s30, 1
          %s462 = smul.addr %s461, 8
          %s463 = scalar_lea.vmem %s3, %s462
        $region68: #{tpu_custom_call.1} parent=59 // pred_fallthru
          _
        // Predicated region
        $region69: #{tpu_custom_call.1} parent=59 // pred_check
          %p464 = pneg %p163
        $region70: #{tpu_custom_call.1} parent=59 // pred_check_branch
          %466 = sbr.rel (%p464) target = $region72
        $region71: #{tpu_custom_call.1} parent=59 // pred_region
          %p467 = scmp.lt.s32.totalorder %s30, 1
          %s468 = scalar_select %p467, %s30, 1
          %s469 = smul.addr %s468, 8
          %s470 = scalar_lea.vmem %s4, %s469
        $region72: #{tpu_custom_call.1} parent=59 // pred_fallthru
          _
        // Predicated region
        $region73: #{tpu_custom_call.1} parent=59 // pred_check
          %p471 = pneg %p189
        $region74: #{tpu_custom_call.1} parent=59 // pred_check_branch
          %473 = sbr.rel (%p471) target = $region76
        $region75: #{tpu_custom_call.1} parent=59 // pred_region
          %p474 = scmp.lt.s32.totalorder %s30, 1
          %s475 = scalar_select %p474, %s30, 1
          %s476 = smul.addr %s475, 8
          %s477 = scalar_lea.vmem %s5, %s476
        $region76: #{tpu_custom_call.1} parent=59 // pred_fallthru
          _
      $region60: #{tpu_custom_call.1} parent=5 // pred_fallthru
        _
    $region6: #{tpu_custom_call.1} parent=1 // loop_footer
      %s23 = sadd.s32 1, %s19
    $region7: #{tpu_custom_call.1} parent=1 // loop_footer_branch
      %18 = sbr.rel target = $region3
    $region8: #{tpu_custom_call.1} parent=1 // loop_exit
      _
    %478 = vsyncpa [#allocation3], 1
    %s479 = scalar_lea.sflag [#allocation3], 1
    %480 = vsyncpa %s479, 1
    %481 = vsyncpa [#allocation6], 1
    %482 = vsyncpa [#allocation4], 1
    %s483 = scalar_lea.sflag [#allocation4], 1
    %484 = vsyncpa %s483, 1

</llo_original>
